<compile_context>
chip_gen: v7x
topology: tpu7x:2x2x1
jax: 0.10.0
libtpu: 0.0.40
codegen_flags: <defaults>
</compile_context>

<pallas_src>
import math
import functools

import jax
import jax.numpy as jnp
from jax import lax
from jax.experimental import pallas as pl
from jax.experimental.pallas import tpu as pltpu


# ---------------------------------------------------------------------------
# Parameter setup (mirror of PositionalEncoding.__init__)
# ---------------------------------------------------------------------------
def make_pe_table(d_model: int, max_len: int) -> jnp.ndarray:
    position = jnp.arange(0, max_len, dtype=jnp.float32)[:, None]          # (L, 1)
    div_term = jnp.exp(
        jnp.arange(0, d_model, 2, dtype=jnp.float32) * (-math.log(10000.0) / d_model)
    )                                                                       # (D/2,)
    pe = jnp.zeros((max_len, d_model), dtype=jnp.float32)
    pe = pe.at[:, 0::2].set(jnp.sin(position * div_term))
    pe = pe.at[:, 1::2].set(jnp.cos(position * div_term))
    # torch: pe.unsqueeze(0).transpose(0, 1)  -> (max_len, 1, d_model)
    return pe[:, None, :]


# ---------------------------------------------------------------------------
# Deterministic keep-mask: counter hash (lowbias32 finalizer) of element index.
# Pure jnp ops -> works in Mosaic and interpret mode; shared with the reference.
# ---------------------------------------------------------------------------
def _keep_mask_from_index(idx_u32, seed_u32, p: float):
    h = idx_u32 ^ (seed_u32 * jnp.uint32(0x9E3779B9))
    h = (h ^ (h >> 16)) * jnp.uint32(0x7FEB352D)
    h = (h ^ (h >> 15)) * jnp.uint32(0x846CA68B)
    h = h ^ (h >> 16)
    threshold = jnp.uint32(min(int(p * (2.0 ** 32)), 2 ** 32 - 1))
    return h >= threshold          # drop with probability ~= p


# ---------------------------------------------------------------------------
# Pallas kernels (work for both the 3-D broadcast layout and the folded 2-D one)
# ---------------------------------------------------------------------------
def _pe_add_eval_kernel(x_ref, pe_ref, o_ref):
    # pe block either matches x block or broadcasts over the batch (size-1) dim.
    o_ref[...] = (x_ref[...] + pe_ref[...]).astype(o_ref.dtype)


def _pe_add_dropout_kernel(seed_ref, x_ref, pe_ref, o_ref, *, p, ts, row_elems):
    y = x_ref[...].astype(jnp.float32) + pe_ref[...].astype(jnp.float32)
    shape = x_ref.shape                              # (ts, B, D) or (ts, B*D)

    # Global flat element index (row-major over the original (S, B, D) array),
    # so the mask is independent of tiling, layout folding and core assignment.
    row = lax.broadcasted_iota(jnp.int32, shape, 0) + pl.program_id(0) * ts
    intra = lax.broadcasted_iota(jnp.int32, shape, len(shape) - 1)
    stride = shape[-1]
    for axis in range(len(shape) - 2, 0, -1):
        intra = intra + lax.broadcasted_iota(jnp.int32, shape, axis) * stride
        stride *= shape[axis]
    idx = (row * row_elems + intra).astype(jnp.uint32)

    keep = _keep_mask_from_index(idx, seed_ref[0].astype(jnp.uint32), p)
    scale = jnp.float32(1.0 / (1.0 - p))             # inverted dropout
    o_ref[...] = jnp.where(keep, y * scale, jnp.float32(0.0)).astype(o_ref.dtype)


# ---------------------------------------------------------------------------
# pallas_call driver (shared by both layouts)
# ---------------------------------------------------------------------------
def _pallas_pe_forward(x_arr, pe_arr, *, p, training, seed, ts):
    """x_arr: (S, ...) ; pe_arr: same rank, trailing dims equal to x's or 1."""
    S = x_arr.shape[0]
    ndim = x_arr.ndim
    grid = (pl.cdiv(S, ts),)
    x_block = (ts,) + x_arr.shape[1:]
    pe_block = (ts,) + pe_arr.shape[1:]
    row_elems = math.prod(x_arr.shape[1:])
    out_shape = jax.ShapeDtypeStruct(x_arr.shape, x_arr.dtype)

    itemsize = jnp.dtype(x_arr.dtype).itemsize
    cost = pl.CostEstimate(
        flops=2 * x_arr.size,
        transcendentals=0,
        bytes_accessed=int(2 * x_arr.size * itemsize
                           + pe_arr.size * jnp.dtype(pe_arr.dtype).itemsize),
    )
    cparams = pltpu.CompilerParams(dimension_semantics=("parallel",))
    zeros = (0,) * (ndim - 1)

    if (not training) or p == 0.0:
        idx_map = lambda s: (s,) + zeros
        grid_spec = pltpu.PrefetchScalarGridSpec(
            num_scalar_prefetch=0,
            grid=grid,
            in_specs=[pl.BlockSpec(x_block, idx_map),
                      pl.BlockSpec(pe_block, idx_map)],
            out_specs=pl.BlockSpec(x_block, idx_map),
        )
        return pl.pallas_call(
            _pe_add_eval_kernel,
            out_shape=out_shape,
            grid_spec=grid_spec,
            compiler_params=cparams,
            cost_estimate=cost,
        )(x_arr, pe_arr)

    idx_map = lambda s, seed_ref: (s,) + zeros
    kernel = functools.partial(
        _pe_add_dropout_kernel, p=float(p), ts=int(ts), row_elems=int(row_elems))
    grid_spec = pltpu.PrefetchScalarGridSpec(
        num_scalar_prefetch=1,                       # seed lives in SMEM
        grid=grid,
        in_specs=[pl.BlockSpec(x_block, idx_map),
                  pl.BlockSpec(pe_block, idx_map)],
        out_specs=pl.BlockSpec(x_block, idx_map),
    )
    seed_arr = jnp.array([seed], dtype=jnp.int32)
    return pl.pallas_call(
        kernel,
        out_shape=out_shape,
        grid_spec=grid_spec,
        compiler_params=cparams,
        cost_estimate=cost,
    )(seed_arr, x_arr, pe_arr)


# ---------------------------------------------------------------------------
# Public wrapper (forward pass of the module)
# ---------------------------------------------------------------------------
def positional_encoding_forward(x, pe, *, p=0.1, training=False, seed=0):
    """x: (S, B, D), pe: (max_len, 1, D). Returns dropout(x + pe[:S])."""
    S, B, D = x.shape
    pe_s = pe[:S]                                    # (S, 1, D) float32

    # Sequence tile: ~2 MiB per x block. With double-buffered in + out blocks
    # (+ the small pe block) that stays < ~8.1 MiB of VMEM -> safe on v5e's
    # 16 MiB default scoped limit and far under v6e/v7x defaults.
    itemsize = jnp.dtype(x.dtype).itemsize
    target_bytes = 2 * 1024 * 1024
    ts = max(1, min(S, target_bytes // max(1, B * D * itemsize)))

    if D % 128 == 0:
        # Already lane-dense: (TS, B, D) blocks, pe broadcast over batch
        # in-kernel from a (TS, 1, D) block that follows the S tile.
        return _pallas_pe_forward(x, pe_s, p=p, training=training, seed=seed, ts=ts)

    # Small / unaligned d_model: fold (B, D) into the lane dim so stores are
    # lane-dense; pe is tiled across the lane dim ONCE in plain JAX (cheap for
    # small D) and streamed as a (TS, B*D) block.
    x2 = x.reshape(S, B * D)
    pe2 = jnp.tile(pe_s[:, 0, :], (1, B))            # (S, B*D), same values per batch
    out2 = _pallas_pe_forward(x2, pe2, p=p, training=training, seed=seed, ts=ts)
    return out2.reshape(S, B, D)


# ---------------------------------------------------------------------------
# Pure-JAX reference for the training path (same hash, same mask)
# ---------------------------------------------------------------------------
def _ref_train(x, pe_s, p, seed):
    ref = x.astype(jnp.float32) + pe_s.astype(jnp.float32)
    idx = jnp.arange(x.size, dtype=jnp.int32).reshape(x.shape).astype(jnp.uint32)
    keep = _keep_mask_from_index(idx, jnp.int32(seed).astype(jnp.uint32), float(p))
    scale = jnp.float32(1.0 / (1.0 - p))
    return jnp.where(keep, ref * scale, jnp.float32(0.0)).astype(x.dtype)


# ---------------------------------------------------------------------------
# Demo / check
# ---------------------------------------------------------------------------
if __name__ == "__main__":
    key = jax.random.PRNGKey(0)
    k1, k2 = jax.random.split(key)

    # --- Case 1: small d_model (exercises the folded, lane-dense 2-D path) ---
    d_model, max_len, S, B = 32, 64, 8, 2
    x = jax.random.normal(k1, (S, B, d_model), dtype=jnp.float32)
    pe = make_pe_table(d_model, max_len)
    ref = x + pe[:S]                                 # broadcast over batch

    out_eval = jax.block_until_ready(
        positional_encoding_forward(x, pe, p=0.1, training=False))
    assert out_eval.shape == x.shape
    assert jnp.allclose(out_eval, ref, atol=1e-6, rtol=1e-6)

    out_train = jax.block_until_ready(
        positional_encoding_forward(x, pe, p=0.1, training=True, seed=1234))
    ref_train = _ref_train(x, pe[:S], 0.1, 1234)
    assert out_train.shape == x.shape
    assert jnp.allclose(out_train, ref_train, atol=1e-5, rtol=1e-5)
    # Surviving elements are exactly ref / (1 - p); some elements are dropped.
    kept = out_train != 0
    assert jnp.allclose(out_train[kept], (ref / 0.9)[kept], atol=1e-5, rtol=1e-5)
    assert int(jnp.sum(~kept)) > 0

    # --- Case 2: lane-dense d_model (exercises the 3-D broadcast path) ---
    d_model2, S2, B2 = 128, 16, 4
    x2 = jax.random.normal(k2, (S2, B2, d_model2), dtype=jnp.float32)
    pe2 = make_pe_table(d_model2, 64)
    ref2 = x2 + pe2[:S2]

    out2_eval = jax.block_until_ready(
        positional_encoding_forward(x2, pe2, p=0.1, training=False))
    assert jnp.allclose(out2_eval, ref2, atol=1e-6, rtol=1e-6)

    out2_train = jax.block_until_ready(
        positional_encoding_forward(x2, pe2, p=0.1, training=True, seed=7))
    ref2_train = _ref_train(x2, pe2[:S2], 0.1, 7)
    assert jnp.allclose(out2_train, ref2_train, atol=1e-5, rtol=1e-5)

    print("KERNEL_OK")
</pallas_src>

<mosaic_0001>
module attributes {stable_mosaic.version = 11 : i64} {
  func.func @_pe_add_eval_kernel(%arg0: i32, %arg1: memref<8x64xf32, #tpu.memory_space<vmem>>, %arg2: memref<8x64xf32, #tpu.memory_space<vmem>>, %arg3: memref<8x64xf32, #tpu.memory_space<vmem>>) attributes {dimension_semantics = [#tpu.dimension_semantics<parallel>], iteration_bounds = array<i64: 1>, scalar_prefetch = 0 : i64, scratch_operands = 0 : i64, tpu.core_type = #tpu.core_type<tc>, window_params = [{transform_indices = @transform_0, window_bounds = array<i64: 8, 64>}, {transform_indices = @transform_1, window_bounds = array<i64: 8, 64>}, {transform_indices = @transform_2, window_bounds = array<i64: 8, 64>}]} {
    %c0 = arith.constant 0 : index
    %c0_0 = arith.constant 0 : index
    %0 = vector.load %arg1[%c0, %c0_0] : memref<8x64xf32, #tpu.memory_space<vmem>>, vector<8x64xf32>
    %c0_1 = arith.constant 0 : index
    %c0_2 = arith.constant 0 : index
    %1 = vector.load %arg2[%c0_1, %c0_2] : memref<8x64xf32, #tpu.memory_space<vmem>>, vector<8x64xf32>
    %2 = arith.addf %0, %1 : vector<8x64xf32>
    %c0_3 = arith.constant 0 : index
    %c0_4 = arith.constant 0 : index
    %3 = vector.load %arg3[%c0_3, %c0_4] : memref<8x64xf32, #tpu.memory_space<vmem>>, vector<8x64xf32>
    tpu.vector_store %arg3[%c0_3, %c0_4], %2 {strides = array<i32>} : memref<8x64xf32, #tpu.memory_space<vmem>>, vector<8x64xf32>,
    return
  }
  func.func @transform_0(%arg0: i32) -> (i32, i32) {
    %c0_i32 = arith.constant 0 : i32
    %c0_i32_0 = arith.constant 0 : i32
    return %arg0, %c0_i32 : i32, i32
  }
  func.func @transform_1(%arg0: i32) -> (i32, i32) {
    %c0_i32 = arith.constant 0 : i32
    %c0_i32_0 = arith.constant 0 : i32
    return %arg0, %c0_i32 : i32, i32
  }
  func.func @transform_2(%arg0: i32) -> (i32, i32) {
    %c0_i32 = arith.constant 0 : i32
    %c0_i32_0 = arith.constant 0 : i32
    return %arg0, %c0_i32 : i32, i32
  }
}

</mosaic_0001>

<llo_original>
// kernel: tpu_custom_call.1
$region0: #{tpu_custom_call.1}
  #allocation0 [shape = 'u32[]', space=smem, size = 0x4, offset = 0x4, fixed_abs, tag = 'smem constant byte address 0x4 - core index']
  #allocation1 [shape = 'u32[144,128]{1,0:T(1,128)}', space=vmem, size = 0x12000, scoped, tag = 'internal scratch']
  %s0 = inlined_call_operand.hbm [shape: f32[8,64], index: 0, kind: input, shape index: {}]
  %s1 = inlined_call_operand.hbm [shape: f32[8,64], index: 1, kind: input, shape index: {}]
  %s2 = inlined_call_operand.hbm [shape: f32[8,64], index: 2, kind: output, shape index: {}]
  %s3 = sld [smem:[#allocation0]]
  $region26: #{tpu_custom_call.1} parent=0
    _
  %s5 = ssub.s32 1, %s3
  %s6 = scalar_select 0, %s5, %s3
  $region1: #{tpu_custom_call.1} parent=0
    #allocation2 [shape = 'u8[4096]{0}', space=vmem, size = 0x1000, scoped, tag = 'input window, operand 0, single buffered']
    #allocation3 [shape = 's32[1]{0}', space=sflag, size = 0x4, scoped, tag = 'scoped memory for tpu_custom_call.1']
    #allocation4 [shape = 's32[1]{0}', space=sflag, size = 0x4, scoped, tag = 'scoped memory for tpu_custom_call.1']
    #allocation5 [shape = 'u8[4096]{0}', space=vmem, size = 0x1000, scoped, tag = 'input window, operand 1, single buffered']
    #allocation6 [shape = 's32[1]{0}', space=sflag, size = 0x4, scoped, tag = 'scoped memory for tpu_custom_call.1']
    #allocation7 [shape = 'u8[4096]{0}', space=vmem, size = 0x1000, scoped, tag = 'output window, operand 0, single buffered']
    %7 = vsyncpa [#allocation3], 0
    %8 = vsyncpa [#allocation6], 0
    %9 = vsyncpa [#allocation4], 0
    // Predicated region
    $region2: #{tpu_custom_call.1} parent=1 // pred_check
      _
    $region3: #{tpu_custom_call.1} parent=1 // pred_check_branch
      %11 = sbr.rel (0) target = $region5
    $region4: #{tpu_custom_call.1} parent=1 // pred_region
      %s13 = ssub.s32 128, 128
      %14 = vsyncadd [#allocation3], %s13
      %s16 = sshll.u32 [#allocation2], 4
      %s17 = int_to_ptr.vmem [resolvable:$true] %s16
      %19 = dma.hbm_to_vmem [thread:$0]  %s0, 128, %s17, [#allocation3]
    $region5: #{tpu_custom_call.1} parent=1 // pred_fallthru
      _
    // Predicated region
    $region6: #{tpu_custom_call.1} parent=1 // pred_check
      _
    $region7: #{tpu_custom_call.1} parent=1 // pred_check_branch
      %21 = sbr.rel (0) target = $region9
    $region8: #{tpu_custom_call.1} parent=1 // pred_region
      %s23 = ssub.s32 128, 128
      %24 = vsyncadd [#allocation6], %s23
      %s26 = sshll.u32 [#allocation5], 4
      %s27 = int_to_ptr.vmem [resolvable:$true] %s26
      %29 = dma.hbm_to_vmem [thread:$0]  %s1, 128, %s27, [#allocation6]
    $region9: #{tpu_custom_call.1} parent=1 // pred_fallthru
      _
    // Predicated region
    $region10: #{tpu_custom_call.1} parent=1 // pred_check
      _
    $region11: #{tpu_custom_call.1} parent=1 // pred_check_branch
      %31 = sbr.rel (0) target = $region13
    $region12: #{tpu_custom_call.1} parent=1 // pred_region
      %32 = dma.done [#allocation3], 128
    $region13: #{tpu_custom_call.1} parent=1 // pred_fallthru
      _
    // Predicated region
    $region14: #{tpu_custom_call.1} parent=1 // pred_check
      _
    $region15: #{tpu_custom_call.1} parent=1 // pred_check_branch
      %34 = sbr.rel (0) target = $region17
    $region16: #{tpu_custom_call.1} parent=1 // pred_region
      %35 = dma.done [#allocation6], 128
    $region17: #{tpu_custom_call.1} parent=1 // pred_fallthru
      _
    %v36 = vld [vmem:[#allocation2] sm:$0xff]
    %v37 = vld [vmem:[#allocation5] sm:$0xff]
    %v38 = vadd.f32 %v36, %v37
    %vm39 = vcmask 523264
    %40 = vst.msk [vmem:[#allocation7] sm:$0xff] %vm39, %v38
    // Predicated region
    $region18: #{tpu_custom_call.1} parent=1 // pred_check
      _
    $region19: #{tpu_custom_call.1} parent=1 // pred_check_branch
      %42 = sbr.rel (0) target = $region21
    $region20: #{tpu_custom_call.1} parent=1 // pred_region
      %s44 = ssub.s32 128, 128
      %45 = vsyncadd [#allocation4], %s44
      %s47 = sshll.u32 [#allocation7], 4
      %s48 = int_to_ptr.vmem [resolvable:$true] %s47
      %50 = dma.vmem_to_hbm [thread:$0]  %s48, 128, %s2, [#allocation4]
    $region21: #{tpu_custom_call.1} parent=1 // pred_fallthru
      _
    // Predicated region
    $region22: #{tpu_custom_call.1} parent=1 // pred_check
      _
    $region23: #{tpu_custom_call.1} parent=1 // pred_check_branch
      %52 = sbr.rel (0) target = $region25
    $region24: #{tpu_custom_call.1} parent=1 // pred_region
      %53 = dma.done [#allocation4], 128
    $region25: #{tpu_custom_call.1} parent=1 // pred_fallthru
      _
    %54 = vsyncpa [#allocation3], 1
    %55 = vsyncpa [#allocation6], 1
    %56 = vsyncpa [#allocation4], 1

</llo_original>
